<compile_context>
chip_gen: v7x
topology: tpu7x:2x2x1
jax: 0.10.0
libtpu: 0.0.40
codegen_flags: <defaults>
</compile_context>

<pallas_src>
import functools

import jax
import jax.numpy as jnp
import numpy as np
from jax.experimental import pallas as pl
from jax.experimental.pallas import tpu as pltpu


def _sh_kernel(levels, dirs_ref, out_ref):
    # dirs_ref: (3, tile_rows, 128) f32 ; out_ref: (levels**2, tile_rows, 128) out_dtype
    x = dirs_ref[0]
    y = dirs_ref[1]
    z = dirs_ref[2]
    dt = out_ref.dtype

    def put(i, v):
        out_ref[i] = v.astype(dt)

    put(0, jnp.full_like(x, 0.28209479177387814))                  # l = 0

    if levels > 1:                                                 # l = 1
        put(1, 0.4886025119029199 * y)
        put(2, 0.4886025119029199 * z)
        put(3, 0.4886025119029199 * x)

    if levels > 2:                                                 # l = 2
        xx = x * x
        yy = y * y
        zz = z * z
        xy = x * y
        yz = y * z
        xz = x * z
        xx_m_yy = xx - yy
        put(4, 1.0925484305920792 * xy)
        put(5, 1.0925484305920792 * yz)
        put(6, 0.9461746957575601 * zz - 0.31539156525251999)
        put(7, 1.0925484305920792 * xz)
        put(8, 0.5462742152960396 * xx_m_yy)

    if levels > 3:                                                 # l = 3
        zz5m1 = 5.0 * zz - 1.0
        put(9, 0.5900435899266435 * y * (3.0 * xx - yy))
        put(10, 2.890611442640554 * xy * z)
        put(11, 0.4570457994644658 * y * zz5m1)
        put(12, 0.3731763325901154 * z * (5.0 * zz - 3.0))
        put(13, 0.4570457994644658 * x * zz5m1)
        put(14, 1.445305721320277 * z * xx_m_yy)
        put(15, 0.5900435899266435 * x * (xx - 3.0 * yy))


def sh_encoding(directions, levels, *, tile_n=131072, out_dtype=jnp.float32,
                channel_major_out=False):
    """Pallas SH encoding.

    directions: (..., 3) -> (..., levels**2) by default, or (levels**2, ...) when
    channel_major_out=True (skips the output-transpose HBM pass entirely).

    tile_n: points per grid step, rounded to whole 128-lane rows, clamped to the input
    and capped at ~half the rows so the parallel grid axis always has >=2 steps
    (both v7x TensorCores).  The 128K default keeps double-buffered VMEM at ~19 MiB,
    covered by the explicit 40 MiB vmem limit on all of v5e/v6e/v7x.
    """
    if levels <= 0 or levels > 4:
        raise ValueError(
            f"Spherical harmonic encoding only supports 1 to 4 levels, requested {levels}"
        )
    if directions.shape[-1] != 3:
        raise ValueError(f"directions must have last dim 3, got {directions.shape}")
    num_comp = levels ** 2
    batch_shape = directions.shape[:-1]
    n = int(np.prod(batch_shape)) if batch_shape else 1

    # Flatten; pad the point count only up to one lane-row (multiple of 128); go
    # channel-major.  The pad+transpose is one cheap ~24N-byte pass (see TODO above);
    # the reshape to (3, rows, 128) is free (row-major contiguous).
    flat = directions.reshape(n, 3).astype(jnp.float32)
    n_pad = ((n + 127) // 128) * 128
    if n_pad != n:
        flat = jnp.pad(flat, ((0, n_pad - n), (0, 0)))
    rows = n_pad // 128
    dirs_cm = flat.T.reshape(3, rows, 128)

    # Block size in whole (8,128) rows; cap at ~half the rows so there are always >=2
    # grid steps (v7x megacore), then clamp to the array (partial last block is fine).
    tile_rows = max(tile_n // 128, 1)
    if rows > 8:
        half_rows = (((rows + 1) // 2) + 7) // 8 * 8
        tile_rows = min(tile_rows, half_rows)
    tile_rows = min(tile_rows, rows)
    if tile_rows < rows and tile_rows % 8 != 0:
        tile_rows = max(8, (tile_rows // 8) * 8)
    grid = (pl.cdiv(rows, tile_rows),)

    out_bytes = jnp.dtype(out_dtype).itemsize
    cost = pl.CostEstimate(
        flops=3 * num_comp * n_pad,
        transcendentals=0,
        bytes_accessed=(12 + out_bytes * num_comp) * n_pad,
    )

    out_cm = pl.pallas_call(
        functools.partial(_sh_kernel, levels),
        out_shape=jax.ShapeDtypeStruct((num_comp, rows, 128), out_dtype),
        grid=grid,
        in_specs=[pl.BlockSpec((3, tile_rows, 128), lambda i: (0, i, 0))],
        out_specs=pl.BlockSpec((num_comp, tile_rows, 128), lambda i: (0, i, 0)),
        compiler_params=pltpu.CompilerParams(
            dimension_semantics=("parallel",),
            vmem_limit_bytes=40 << 20,
        ),
        cost_estimate=cost,
    )(dirs_cm)

    out_cm = out_cm.reshape(num_comp, n_pad)

    if channel_major_out:
        # Fast path (review option (a)): no transpose pass; shape (num_comp, *batch).
        out = out_cm if n == n_pad else out_cm[:, :n]
        return out.reshape(num_comp, *batch_shape)

    # nn.Module contract (..., num_comp): slice valid columns and transpose in one
    # lane-dense XLA pass.  This is the only remaining extra HBM pass (see TODO above).
    out = out_cm[:, :n].T
    return out.reshape(*batch_shape, num_comp)


def sh_encoding_reference(directions, levels):
    """Pure-JAX reference matching PyTorch components_from_spherical_harmonics."""
    x = directions[..., 0]
    y = directions[..., 1]
    z = directions[..., 2]
    xx, yy, zz = x * x, y * y, z * z
    comps = [jnp.full_like(x, 0.28209479177387814)]
    if levels > 1:
        comps += [0.4886025119029199 * y, 0.4886025119029199 * z, 0.4886025119029199 * x]
    if levels > 2:
        comps += [
            1.0925484305920792 * x * y,
            1.0925484305920792 * y * z,
            0.9461746957575601 * zz - 0.31539156525251999,
            1.0925484305920792 * x * z,
            0.5462742152960396 * (xx - yy),
        ]
    if levels > 3:
        comps += [
            0.5900435899266435 * y * (3.0 * xx - yy),
            2.890611442640554 * x * y * z,
            0.4570457994644658 * y * (5.0 * zz - 1.0),
            0.3731763325901154 * z * (5.0 * zz - 3.0),
            0.4570457994644658 * x * (5.0 * zz - 1.0),
            1.445305721320277 * z * (xx - yy),
            0.5900435899266435 * x * (xx - 3.0 * yy),
        ]
    return jnp.stack(comps, axis=-1)


if __name__ == "__main__":
    key = jax.random.PRNGKey(0)
    k0, k1 = jax.random.split(key)

    # Small ray-direction batch matching the module contract: (batch=2, rays=8, 3).
    raw = jax.random.normal(k0, (2, 8, 3), dtype=jnp.float32)
    dirs = raw / jnp.linalg.norm(raw, axis=-1, keepdims=True)

    levels = 4  # out_dims = 16; SHEncoding has no learnable parameters.
    out = jax.block_until_ready(sh_encoding(dirs, levels))
    assert out.shape == (2, 8, levels ** 2), out.shape
    ref = sh_encoding_reference(dirs, levels)
    np.testing.assert_allclose(np.asarray(out), np.asarray(ref), rtol=1e-5, atol=1e-5)

    # Channel-major fast path (no output-transpose HBM pass).
    out_cm = jax.block_until_ready(sh_encoding(dirs, levels, channel_major_out=True))
    assert out_cm.shape == (levels ** 2, 2, 8), out_cm.shape
    np.testing.assert_allclose(
        np.asarray(out_cm), np.asarray(jnp.moveaxis(ref, -1, 0)), rtol=1e-5, atol=1e-5)

    # Multi-block + partial-block path (n=1200, not a multiple of 128, small tile ->
    # grid of 2 with the half-row cap active) and a lower-levels branch (levels=2).
    raw2 = jax.random.normal(k1, (4, 300, 3), dtype=jnp.float32)
    dirs2 = raw2 / jnp.linalg.norm(raw2, axis=-1, keepdims=True)
    out2 = jax.block_until_ready(sh_encoding(dirs2, 4, tile_n=1024))
    np.testing.assert_allclose(
        np.asarray(out2), np.asarray(sh_encoding_reference(dirs2, 4)),
        rtol=1e-5, atol=1e-5)

    out3 = jax.block_until_ready(sh_encoding(dirs, 2))
    np.testing.assert_allclose(
        np.asarray(out3), np.asarray(sh_encoding_reference(dirs, 2)),
        rtol=1e-5, atol=1e-5)

    print("KERNEL_OK")
</pallas_src>

<mosaic_0001>
module attributes {stable_mosaic.version = 11 : i64} {
  func.func @_sh_kernel(%arg0: i32, %arg1: memref<3x1x128xf32, #tpu.memory_space<vmem>>, %arg2: memref<16x1x128xf32, #tpu.memory_space<vmem>>) attributes {dimension_semantics = [#tpu.dimension_semantics<parallel>], iteration_bounds = array<i64: 1>, scalar_prefetch = 0 : i64, scratch_operands = 0 : i64, tpu.core_type = #tpu.core_type<tc>, window_params = [{transform_indices = @transform_0, window_bounds = array<i64: 3, 1, 128>}, {transform_indices = @transform_1, window_bounds = array<i64: 16, 1, 128>}]} {
    %c0 = arith.constant 0 : index
    %c0_0 = arith.constant 0 : index
    %c0_1 = arith.constant 0 : index
    %0 = vector.load %arg1[%c0, %c0_0, %c0_1] : memref<3x1x128xf32, #tpu.memory_space<vmem>>, vector<1x1x128xf32>
    %1 = vector.shape_cast %0 : vector<1x1x128xf32> to vector<1x128xf32>
    %c1 = arith.constant 1 : index
    %c0_2 = arith.constant 0 : index
    %c0_3 = arith.constant 0 : index
    %2 = vector.load %arg1[%c1, %c0_2, %c0_3] : memref<3x1x128xf32, #tpu.memory_space<vmem>>, vector<1x1x128xf32>
    %3 = vector.shape_cast %2 : vector<1x1x128xf32> to vector<1x128xf32>
    %c2 = arith.constant 2 : index
    %c0_4 = arith.constant 0 : index
    %c0_5 = arith.constant 0 : index
    %4 = vector.load %arg1[%c2, %c0_4, %c0_5] : memref<3x1x128xf32, #tpu.memory_space<vmem>>, vector<1x1x128xf32>
    %5 = vector.shape_cast %4 : vector<1x1x128xf32> to vector<1x128xf32>
    %cst = arith.constant 0.282094806 : f32
    %6 = vector.broadcast %cst : f32 to vector<1x128xf32>
    %c0_6 = arith.constant 0 : index
    %c0_7 = arith.constant 0 : index
    %c0_8 = arith.constant 0 : index
    %7 = vector.load %arg2[%c0_6, %c0_7, %c0_8] : memref<16x1x128xf32, #tpu.memory_space<vmem>>, vector<1x1x128xf32>
    %8 = vector.shape_cast %7 : vector<1x1x128xf32> to vector<1x128xf32>
    %9 = vector.shape_cast %6 : vector<1x128xf32> to vector<1x1x128xf32>
    tpu.vector_store %arg2[%c0_6, %c0_7, %c0_8], %9 {strides = array<i32>} : memref<16x1x128xf32, #tpu.memory_space<vmem>>, vector<1x1x128xf32>,
    %cst_9 = arith.constant 0.488602519 : f32
    %10 = vector.broadcast %cst_9 : f32 to vector<1x128xf32>
    %11 = arith.mulf %10, %3 : vector<1x128xf32>
    %c1_10 = arith.constant 1 : index
    %c0_11 = arith.constant 0 : index
    %c0_12 = arith.constant 0 : index
    %12 = vector.load %arg2[%c1_10, %c0_11, %c0_12] : memref<16x1x128xf32, #tpu.memory_space<vmem>>, vector<1x1x128xf32>
    %13 = vector.shape_cast %12 : vector<1x1x128xf32> to vector<1x128xf32>
    %14 = vector.shape_cast %11 : vector<1x128xf32> to vector<1x1x128xf32>
    tpu.vector_store %arg2[%c1_10, %c0_11, %c0_12], %14 {strides = array<i32>} : memref<16x1x128xf32, #tpu.memory_space<vmem>>, vector<1x1x128xf32>,
    %cst_13 = arith.constant 0.488602519 : f32
    %15 = vector.broadcast %cst_13 : f32 to vector<1x128xf32>
    %16 = arith.mulf %15, %5 : vector<1x128xf32>
    %c2_14 = arith.constant 2 : index
    %c0_15 = arith.constant 0 : index
    %c0_16 = arith.constant 0 : index
    %17 = vector.load %arg2[%c2_14, %c0_15, %c0_16] : memref<16x1x128xf32, #tpu.memory_space<vmem>>, vector<1x1x128xf32>
    %18 = vector.shape_cast %17 : vector<1x1x128xf32> to vector<1x128xf32>
    %19 = vector.shape_cast %16 : vector<1x128xf32> to vector<1x1x128xf32>
    tpu.vector_store %arg2[%c2_14, %c0_15, %c0_16], %19 {strides = array<i32>} : memref<16x1x128xf32, #tpu.memory_space<vmem>>, vector<1x1x128xf32>,
    %cst_17 = arith.constant 0.488602519 : f32
    %20 = vector.broadcast %cst_17 : f32 to vector<1x128xf32>
    %21 = arith.mulf %20, %1 : vector<1x128xf32>
    %c3 = arith.constant 3 : index
    %c0_18 = arith.constant 0 : index
    %c0_19 = arith.constant 0 : index
    %22 = vector.load %arg2[%c3, %c0_18, %c0_19] : memref<16x1x128xf32, #tpu.memory_space<vmem>>, vector<1x1x128xf32>
    %23 = vector.shape_cast %22 : vector<1x1x128xf32> to vector<1x128xf32>
    %24 = vector.shape_cast %21 : vector<1x128xf32> to vector<1x1x128xf32>
    tpu.vector_store %arg2[%c3, %c0_18, %c0_19], %24 {strides = array<i32>} : memref<16x1x128xf32, #tpu.memory_space<vmem>>, vector<1x1x128xf32>,
    %25 = arith.mulf %1, %1 : vector<1x128xf32>
    %26 = arith.mulf %3, %3 : vector<1x128xf32>
    %27 = arith.mulf %5, %5 : vector<1x128xf32>
    %28 = arith.mulf %1, %3 : vector<1x128xf32>
    %29 = arith.mulf %3, %5 : vector<1x128xf32>
    %30 = arith.mulf %1, %5 : vector<1x128xf32>
    %31 = arith.subf %25, %26 : vector<1x128xf32>
    %cst_20 = arith.constant 1.09254849 : f32
    %32 = vector.broadcast %cst_20 : f32 to vector<1x128xf32>
    %33 = arith.mulf %32, %28 : vector<1x128xf32>
    %c4 = arith.constant 4 : index
    %c0_21 = arith.constant 0 : index
    %c0_22 = arith.constant 0 : index
    %34 = vector.load %arg2[%c4, %c0_21, %c0_22] : memref<16x1x128xf32, #tpu.memory_space<vmem>>, vector<1x1x128xf32>
    %35 = vector.shape_cast %34 : vector<1x1x128xf32> to vector<1x128xf32>
    %36 = vector.shape_cast %33 : vector<1x128xf32> to vector<1x1x128xf32>
    tpu.vector_store %arg2[%c4, %c0_21, %c0_22], %36 {strides = array<i32>} : memref<16x1x128xf32, #tpu.memory_space<vmem>>, vector<1x1x128xf32>,
    %cst_23 = arith.constant 1.09254849 : f32
    %37 = vector.broadcast %cst_23 : f32 to vector<1x128xf32>
    %38 = arith.mulf %37, %29 : vector<1x128xf32>
    %c5 = arith.constant 5 : index
    %c0_24 = arith.constant 0 : index
    %c0_25 = arith.constant 0 : index
    %39 = vector.load %arg2[%c5, %c0_24, %c0_25] : memref<16x1x128xf32, #tpu.memory_space<vmem>>, vector<1x1x128xf32>
    %40 = vector.shape_cast %39 : vector<1x1x128xf32> to vector<1x128xf32>
    %41 = vector.shape_cast %38 : vector<1x128xf32> to vector<1x1x128xf32>
    tpu.vector_store %arg2[%c5, %c0_24, %c0_25], %41 {strides = array<i32>} : memref<16x1x128xf32, #tpu.memory_space<vmem>>, vector<1x1x128xf32>,
    %cst_26 = arith.constant 0.946174681 : f32
    %42 = vector.broadcast %cst_26 : f32 to vector<1x128xf32>
    %43 = arith.mulf %42, %27 : vector<1x128xf32>
    %cst_27 = arith.constant 0.31539157 : f32
    %44 = vector.broadcast %cst_27 : f32 to vector<1x128xf32>
    %45 = arith.subf %43, %44 : vector<1x128xf32>
    %c6 = arith.constant 6 : index
    %c0_28 = arith.constant 0 : index
    %c0_29 = arith.constant 0 : index
    %46 = vector.load %arg2[%c6, %c0_28, %c0_29] : memref<16x1x128xf32, #tpu.memory_space<vmem>>, vector<1x1x128xf32>
    %47 = vector.shape_cast %46 : vector<1x1x128xf32> to vector<1x128xf32>
    %48 = vector.shape_cast %45 : vector<1x128xf32> to vector<1x1x128xf32>
    tpu.vector_store %arg2[%c6, %c0_28, %c0_29], %48 {strides = array<i32>} : memref<16x1x128xf32, #tpu.memory_space<vmem>>, vector<1x1x128xf32>,
    %cst_30 = arith.constant 1.09254849 : f32
    %49 = vector.broadcast %cst_30 : f32 to vector<1x128xf32>
    %50 = arith.mulf %49, %30 : vector<1x128xf32>
    %c7 = arith.constant 7 : index
    %c0_31 = arith.constant 0 : index
    %c0_32 = arith.constant 0 : index
    %51 = vector.load %arg2[%c7, %c0_31, %c0_32] : memref<16x1x128xf32, #tpu.memory_space<vmem>>, vector<1x1x128xf32>
    %52 = vector.shape_cast %51 : vector<1x1x128xf32> to vector<1x128xf32>
    %53 = vector.shape_cast %50 : vector<1x128xf32> to vector<1x1x128xf32>
    tpu.vector_store %arg2[%c7, %c0_31, %c0_32], %53 {strides = array<i32>} : memref<16x1x128xf32, #tpu.memory_space<vmem>>, vector<1x1x128xf32>,
    %cst_33 = arith.constant 0.546274245 : f32
    %54 = vector.broadcast %cst_33 : f32 to vector<1x128xf32>
    %55 = arith.mulf %54, %31 : vector<1x128xf32>
    %c8 = arith.constant 8 : index
    %c0_34 = arith.constant 0 : index
    %c0_35 = arith.constant 0 : index
    %56 = vector.load %arg2[%c8, %c0_34, %c0_35] : memref<16x1x128xf32, #tpu.memory_space<vmem>>, vector<1x1x128xf32>
    %57 = vector.shape_cast %56 : vector<1x1x128xf32> to vector<1x128xf32>
    %58 = vector.shape_cast %55 : vector<1x128xf32> to vector<1x1x128xf32>
    tpu.vector_store %arg2[%c8, %c0_34, %c0_35], %58 {strides = array<i32>} : memref<16x1x128xf32, #tpu.memory_space<vmem>>, vector<1x1x128xf32>,
    %cst_36 = arith.constant 5.000000e+00 : f32
    %59 = vector.broadcast %cst_36 : f32 to vector<1x128xf32>
    %60 = arith.mulf %59, %27 : vector<1x128xf32>
    %cst_37 = arith.constant 1.000000e+00 : f32
    %61 = vector.broadcast %cst_37 : f32 to vector<1x128xf32>
    %62 = arith.subf %60, %61 : vector<1x128xf32>
    %cst_38 = arith.constant 0.590043604 : f32
    %63 = vector.broadcast %cst_38 : f32 to vector<1x128xf32>
    %64 = arith.mulf %63, %3 : vector<1x128xf32>
    %cst_39 = arith.constant 3.000000e+00 : f32
    %65 = vector.broadcast %cst_39 : f32 to vector<1x128xf32>
    %66 = arith.mulf %65, %25 : vector<1x128xf32>
    %67 = arith.subf %66, %26 : vector<1x128xf32>
    %68 = arith.mulf %64, %67 : vector<1x128xf32>
    %c9 = arith.constant 9 : index
    %c0_40 = arith.constant 0 : index
    %c0_41 = arith.constant 0 : index
    %69 = vector.load %arg2[%c9, %c0_40, %c0_41] : memref<16x1x128xf32, #tpu.memory_space<vmem>>, vector<1x1x128xf32>
    %70 = vector.shape_cast %69 : vector<1x1x128xf32> to vector<1x128xf32>
    %71 = vector.shape_cast %68 : vector<1x128xf32> to vector<1x1x128xf32>
    tpu.vector_store %arg2[%c9, %c0_40, %c0_41], %71 {strides = array<i32>} : memref<16x1x128xf32, #tpu.memory_space<vmem>>, vector<1x1x128xf32>,
    %cst_42 = arith.constant 2.89061141 : f32
    %72 = vector.broadcast %cst_42 : f32 to vector<1x128xf32>
    %73 = arith.mulf %72, %28 : vector<1x128xf32>
    %74 = arith.mulf %73, %5 : vector<1x128xf32>
    %c10 = arith.constant 10 : index
    %c0_43 = arith.constant 0 : index
    %c0_44 = arith.constant 0 : index
    %75 = vector.load %arg2[%c10, %c0_43, %c0_44] : memref<16x1x128xf32, #tpu.memory_space<vmem>>, vector<1x1x128xf32>
    %76 = vector.shape_cast %75 : vector<1x1x128xf32> to vector<1x128xf32>
    %77 = vector.shape_cast %74 : vector<1x128xf32> to vector<1x1x128xf32>
    tpu.vector_store %arg2[%c10, %c0_43, %c0_44], %77 {strides = array<i32>} : memref<16x1x128xf32, #tpu.memory_space<vmem>>, vector<1x1x128xf32>,
    %cst_45 = arith.constant 0.457045794 : f32
    %78 = vector.broadcast %cst_45 : f32 to vector<1x128xf32>
    %79 = arith.mulf %78, %3 : vector<1x128xf32>
    %80 = arith.mulf %79, %62 : vector<1x128xf32>
    %c11 = arith.constant 11 : index
    %c0_46 = arith.constant 0 : index
    %c0_47 = arith.constant 0 : index
    %81 = vector.load %arg2[%c11, %c0_46, %c0_47] : memref<16x1x128xf32, #tpu.memory_space<vmem>>, vector<1x1x128xf32>
    %82 = vector.shape_cast %81 : vector<1x1x128xf32> to vector<1x128xf32>
    %83 = vector.shape_cast %80 : vector<1x128xf32> to vector<1x1x128xf32>
    tpu.vector_store %arg2[%c11, %c0_46, %c0_47], %83 {strides = array<i32>} : memref<16x1x128xf32, #tpu.memory_space<vmem>>, vector<1x1x128xf32>,
    %cst_48 = arith.constant 0.373176336 : f32
    %84 = vector.broadcast %cst_48 : f32 to vector<1x128xf32>
    %85 = arith.mulf %84, %5 : vector<1x128xf32>
    %cst_49 = arith.constant 5.000000e+00 : f32
    %86 = vector.broadcast %cst_49 : f32 to vector<1x128xf32>
    %87 = arith.mulf %86, %27 : vector<1x128xf32>
    %cst_50 = arith.constant 3.000000e+00 : f32
    %88 = vector.broadcast %cst_50 : f32 to vector<1x128xf32>
    %89 = arith.subf %87, %88 : vector<1x128xf32>
    %90 = arith.mulf %85, %89 : vector<1x128xf32>
    %c12 = arith.constant 12 : index
    %c0_51 = arith.constant 0 : index
    %c0_52 = arith.constant 0 : index
    %91 = vector.load %arg2[%c12, %c0_51, %c0_52] : memref<16x1x128xf32, #tpu.memory_space<vmem>>, vector<1x1x128xf32>
    %92 = vector.shape_cast %91 : vector<1x1x128xf32> to vector<1x128xf32>
    %93 = vector.shape_cast %90 : vector<1x128xf32> to vector<1x1x128xf32>
    tpu.vector_store %arg2[%c12, %c0_51, %c0_52], %93 {strides = array<i32>} : memref<16x1x128xf32, #tpu.memory_space<vmem>>, vector<1x1x128xf32>,
    %cst_53 = arith.constant 0.457045794 : f32
    %94 = vector.broadcast %cst_53 : f32 to vector<1x128xf32>
    %95 = arith.mulf %94, %1 : vector<1x128xf32>
    %96 = arith.mulf %95, %62 : vector<1x128xf32>
    %c13 = arith.constant 13 : index
    %c0_54 = arith.constant 0 : index
    %c0_55 = arith.constant 0 : index
    %97 = vector.load %arg2[%c13, %c0_54, %c0_55] : memref<16x1x128xf32, #tpu.memory_space<vmem>>, vector<1x1x128xf32>
    %98 = vector.shape_cast %97 : vector<1x1x128xf32> to vector<1x128xf32>
    %99 = vector.shape_cast %96 : vector<1x128xf32> to vector<1x1x128xf32>
    tpu.vector_store %arg2[%c13, %c0_54, %c0_55], %99 {strides = array<i32>} : memref<16x1x128xf32, #tpu.memory_space<vmem>>, vector<1x1x128xf32>,
    %cst_56 = arith.constant 1.44530571 : f32
    %100 = vector.broadcast %cst_56 : f32 to vector<1x128xf32>
    %101 = arith.mulf %100, %5 : vector<1x128xf32>
    %102 = arith.mulf %101, %31 : vector<1x128xf32>
    %c14 = arith.constant 14 : index
    %c0_57 = arith.constant 0 : index
    %c0_58 = arith.constant 0 : index
    %103 = vector.load %arg2[%c14, %c0_57, %c0_58] : memref<16x1x128xf32, #tpu.memory_space<vmem>>, vector<1x1x128xf32>
    %104 = vector.shape_cast %103 : vector<1x1x128xf32> to vector<1x128xf32>
    %105 = vector.shape_cast %102 : vector<1x128xf32> to vector<1x1x128xf32>
    tpu.vector_store %arg2[%c14, %c0_57, %c0_58], %105 {strides = array<i32>} : memref<16x1x128xf32, #tpu.memory_space<vmem>>, vector<1x1x128xf32>,
    %cst_59 = arith.constant 0.590043604 : f32
    %106 = vector.broadcast %cst_59 : f32 to vector<1x128xf32>
    %107 = arith.mulf %106, %1 : vector<1x128xf32>
    %cst_60 = arith.constant 3.000000e+00 : f32
    %108 = vector.broadcast %cst_60 : f32 to vector<1x128xf32>
    %109 = arith.mulf %108, %26 : vector<1x128xf32>
    %110 = arith.subf %25, %109 : vector<1x128xf32>
    %111 = arith.mulf %107, %110 : vector<1x128xf32>
    %c15 = arith.constant 15 : index
    %c0_61 = arith.constant 0 : index
    %c0_62 = arith.constant 0 : index
    %112 = vector.load %arg2[%c15, %c0_61, %c0_62] : memref<16x1x128xf32, #tpu.memory_space<vmem>>, vector<1x1x128xf32>
    %113 = vector.shape_cast %112 : vector<1x1x128xf32> to vector<1x128xf32>
    %114 = vector.shape_cast %111 : vector<1x128xf32> to vector<1x1x128xf32>
    tpu.vector_store %arg2[%c15, %c0_61, %c0_62], %114 {strides = array<i32>} : memref<16x1x128xf32, #tpu.memory_space<vmem>>, vector<1x1x128xf32>,
    return
  }
  func.func @transform_0(%arg0: i32) -> (i32, i32, i32) {
    %c0_i32 = arith.constant 0 : i32
    %c0_i32_0 = arith.constant 0 : i32
    %c0_i32_1 = arith.constant 0 : i32
    return %c0_i32, %arg0, %c0_i32_0 : i32, i32, i32
  }
  func.func @transform_1(%arg0: i32) -> (i32, i32, i32) {
    %c0_i32 = arith.constant 0 : i32
    %c0_i32_0 = arith.constant 0 : i32
    %c0_i32_1 = arith.constant 0 : i32
    return %c0_i32, %arg0, %c0_i32_0 : i32, i32, i32
  }
}

</mosaic_0001>

<llo_original>
// kernel: tpu_custom_call.1
$region0: #{tpu_custom_call.1}
  #allocation0 [shape = 'u32[]', space=smem, size = 0x4, offset = 0x4, fixed_abs, tag = 'smem constant byte address 0x4 - core index']
  #allocation1 [shape = 'u32[144,128]{1,0:T(1,128)}', space=vmem, size = 0x12000, scoped, tag = 'internal scratch']
  %s0 = inlined_call_operand.hbm [shape: f32[3,1,128], index: 0, kind: input, shape index: {}]
  %s1 = inlined_call_operand.hbm [shape: f32[16,1,128], index: 1, kind: output, shape index: {}]
  %s2 = sld [smem:[#allocation0]]
  $region18: #{tpu_custom_call.1} parent=0
    _
  %s4 = ssub.s32 1, %s2
  %s5 = scalar_select 0, %s4, %s2
  $region1: #{tpu_custom_call.1} parent=0
    #allocation2 [shape = 'u8[1536]{0}', space=vmem, size = 0x800, scoped, tag = 'input window, operand 0, single buffered']
    #allocation3 [shape = 's32[1]{0}', space=sflag, size = 0x4, scoped, tag = 'scoped memory for tpu_custom_call.1']
    #allocation4 [shape = 's32[1]{0}', space=sflag, size = 0x4, scoped, tag = 'scoped memory for tpu_custom_call.1']
    #allocation5 [shape = 'u8[8192]{0}', space=vmem, size = 0x2000, scoped, tag = 'output window, operand 0, single buffered']
    %6 = vsyncpa [#allocation3], 0
    %7 = vsyncpa [#allocation4], 0
    // Predicated region
    $region2: #{tpu_custom_call.1} parent=1 // pred_check
      _
    $region3: #{tpu_custom_call.1} parent=1 // pred_check_branch
      %9 = sbr.rel (0) target = $region5
    $region4: #{tpu_custom_call.1} parent=1 // pred_region
      %s11 = ssub.s32 48, 48
      %12 = vsyncadd [#allocation3], %s11
      %s13 = sshll.u32 [#allocation2], 4
      %s14 = int_to_ptr.vmem [resolvable:$true] %s13
      %19 = dma.hbm_to_vmem [thread:$0]  %s0, 48, %s14, [#allocation3], 16, 16, 1
    $region5: #{tpu_custom_call.1} parent=1 // pred_fallthru
      _
    // Predicated region
    $region6: #{tpu_custom_call.1} parent=1 // pred_check
      _
    $region7: #{tpu_custom_call.1} parent=1 // pred_check_branch
      %21 = sbr.rel (0) target = $region9
    $region8: #{tpu_custom_call.1} parent=1 // pred_region
      %22 = dma.done [#allocation3], 48
    $region9: #{tpu_custom_call.1} parent=1 // pred_fallthru
      _
    %v23 = vld [vmem:[#allocation2] sm:$0x1]
    %s24 = scalar_lea.vmem [#allocation2], 1
    %v25 = vld [vmem:[%s24] sm:$0x1]
    %s26 = scalar_lea.vmem [#allocation2], 2
    %v27 = vld [vmem:[%s26] sm:$0x1]
    %28 = vst [vmem:[#allocation5] sm:$0x1] 0.2820948
    %v29 = vmul.f32 %v25, 0.48860252
    %s30 = scalar_lea.vmem [#allocation5], 1
    %31 = vst [vmem:[%s30] sm:$0x1] %v29
    %v32 = vmul.f32 %v27, 0.48860252
    %s33 = scalar_lea.vmem [#allocation5], 2
    %34 = vst [vmem:[%s33] sm:$0x1] %v32
    %v35 = vmul.f32 %v23, 0.48860252
    %s36 = scalar_lea.vmem [#allocation5], 3
    %37 = vst [vmem:[%s36] sm:$0x1] %v35
    %v38 = vmul.f32 %v23, %v23
    %v39 = vmul.f32 %v25, %v25
    %v40 = vmul.f32 %v27, %v27
    %v41 = vmul.f32 %v23, %v25
    %v42 = vmul.f32 %v25, %v27
    %v43 = vmul.f32 %v23, %v27
    %v44 = vsub.f32 %v38, %v39
    %v45 = vmul.f32 %v41, 1.0925485
    %s46 = scalar_lea.vmem [#allocation5], 4
    %47 = vst [vmem:[%s46] sm:$0x1] %v45
    %v48 = vmul.f32 %v42, 1.0925485
    %s49 = scalar_lea.vmem [#allocation5], 5
    %50 = vst [vmem:[%s49] sm:$0x1] %v48
    %v51 = vmul.f32 %v40, 0.9461747
    %v52 = vsub.f32 %v51, 0.31539157
    %s53 = scalar_lea.vmem [#allocation5], 6
    %54 = vst [vmem:[%s53] sm:$0x1] %v52
    %v55 = vmul.f32 %v43, 1.0925485
    %s56 = scalar_lea.vmem [#allocation5], 7
    %57 = vst [vmem:[%s56] sm:$0x1] %v55
    %v58 = vmul.f32 %v44, 0.54627424
    %s59 = scalar_lea.vmem [#allocation5], 8
    %60 = vst [vmem:[%s59] sm:$0x1] %v58
    %v61 = vmul.f32 %v40, 5.0
    %v62 = vsub.f32 %v61, 1.0
    %v63 = vmul.f32 %v25, 0.5900436
    %v64 = vmul.f32 %v38, 3.0
    %v65 = vsub.f32 %v64, %v39
    %v66 = vmul.f32 %v63, %v65
    %s67 = scalar_lea.vmem [#allocation5], 9
    %68 = vst [vmem:[%s67] sm:$0x1] %v66
    %v69 = vmul.f32 %v41, 2.8906114
    %v70 = vmul.f32 %v69, %v27
    %s71 = scalar_lea.vmem [#allocation5], 10
    %72 = vst [vmem:[%s71] sm:$0x1] %v70
    %v73 = vmul.f32 %v25, 0.4570458
    %v74 = vmul.f32 %v73, %v62
    %s75 = scalar_lea.vmem [#allocation5], 11
    %76 = vst [vmem:[%s75] sm:$0x1] %v74
    %v77 = vmul.f32 %v27, 0.37317634
    %v78 = vsub.f32 %v61, 3.0
    %v79 = vmul.f32 %v77, %v78
    %s80 = scalar_lea.vmem [#allocation5], 12
    %81 = vst [vmem:[%s80] sm:$0x1] %v79
    %v82 = vmul.f32 %v23, 0.4570458
    %v83 = vmul.f32 %v82, %v62
    %s84 = scalar_lea.vmem [#allocation5], 13
    %85 = vst [vmem:[%s84] sm:$0x1] %v83
    %v86 = vmul.f32 %v27, 1.4453057
    %v87 = vmul.f32 %v86, %v44
    %s88 = scalar_lea.vmem [#allocation5], 14
    %89 = vst [vmem:[%s88] sm:$0x1] %v87
    %v90 = vmul.f32 %v23, 0.5900436
    %v91 = vmul.f32 %v39, 3.0
    %v92 = vsub.f32 %v38, %v91
    %v93 = vmul.f32 %v90, %v92
    %s94 = scalar_lea.vmem [#allocation5], 15
    %95 = vst [vmem:[%s94] sm:$0x1] %v93
    // Predicated region
    $region10: #{tpu_custom_call.1} parent=1 // pred_check
      _
    $region11: #{tpu_custom_call.1} parent=1 // pred_check_branch
      %97 = sbr.rel (0) target = $region13
    $region12: #{tpu_custom_call.1} parent=1 // pred_region
      %s99 = ssub.s32 256, 256
      %100 = vsyncadd [#allocation4], %s99
      %s101 = sshll.u32 [#allocation5], 4
      %s102 = int_to_ptr.vmem [resolvable:$true] %s101
      %107 = dma.vmem_to_hbm [thread:$0]  %s102, 256, %s1, [#allocation4], 16, 16, 1
    $region13: #{tpu_custom_call.1} parent=1 // pred_fallthru
      _
    // Predicated region
    $region14: #{tpu_custom_call.1} parent=1 // pred_check
      _
    $region15: #{tpu_custom_call.1} parent=1 // pred_check_branch
      %109 = sbr.rel (0) target = $region17
    $region16: #{tpu_custom_call.1} parent=1 // pred_region
      %110 = dma.done [#allocation4], 256
    $region17: #{tpu_custom_call.1} parent=1 // pred_fallthru
      _
    %111 = vsyncpa [#allocation3], 1
    %112 = vsyncpa [#allocation4], 1

</llo_original>
